<compile_context>
chip_gen: v7x
topology: tpu7x:2x2x1
jax: 0.10.0
libtpu: 0.0.40
codegen_flags: <defaults>
</compile_context>

<pallas_src>
import functools

import jax
import jax.numpy as jnp
from jax.experimental import pallas as pl
from jax.experimental.pallas import tpu as pltpu

BN_EPS = 1e-5


# ---------------------------------------------------------------- kernels ---

def _bn_relu(y, bn_ref):
    """BatchNorm1d (training mode, biased var) + ReLU, one-pass stats."""
    inv_b = 1.0 / y.shape[0]
    s1 = jnp.sum(y, axis=0, keepdims=True)
    s2 = jnp.sum(y * y, axis=0, keepdims=True)
    mean = s1 * inv_b
    var = jnp.maximum(s2 * inv_b - mean * mean, 0.0)
    gamma = bn_ref[0:1, :]
    beta = bn_ref[1:2, :]
    y_hat = (y - mean) * jax.lax.rsqrt(var + BN_EPS)
    return jnp.maximum(y_hat * gamma + beta, 0.0)


def _actor_fused_plain_kernel(x_ref, w1_ref, b1_ref, w2_ref, b2_ref,
                              w3_ref, b3_ref, o_ref, *, max_action):
    h1 = jnp.dot(x_ref[...], w1_ref[...], preferred_element_type=jnp.float32)
    h1 = jnp.maximum(h1 + b1_ref[...], 0.0)
    h2 = jnp.dot(h1, w2_ref[...], preferred_element_type=jnp.float32)
    h2 = jnp.maximum(h2 + b2_ref[...], 0.0)
    y = jnp.dot(h2, w3_ref[...], preferred_element_type=jnp.float32)
    y = y + b3_ref[...]
    o_ref[...] = (max_action * jnp.tanh(y)).astype(o_ref.dtype)


def _actor_fused_bn_kernel(x_ref, w1_ref, bn1_ref, w2_ref, bn2_ref,
                           w3_ref, b3_ref, o_ref, *, max_action):
    # Linear bias omitted in BN layers: it is cancelled by mean subtraction.
    h1 = jnp.dot(x_ref[...], w1_ref[...], preferred_element_type=jnp.float32)
    h1 = _bn_relu(h1, bn1_ref)
    h2 = jnp.dot(h1, w2_ref[...], preferred_element_type=jnp.float32)
    h2 = _bn_relu(h2, bn2_ref)
    y = jnp.dot(h2, w3_ref[...], preferred_element_type=jnp.float32)
    y = y + b3_ref[...]
    o_ref[...] = (max_action * jnp.tanh(y)).astype(o_ref.dtype)


# ---------------------------------------------------------------- wrappers ---

def _vmem_spec():
    return pl.BlockSpec(memory_space=pltpu.MemorySpace.VMEM)


def _fused_call(kernel, out_shape, *args):
    return pl.pallas_call(
        kernel,
        out_shape=jax.ShapeDtypeStruct(out_shape, jnp.float32),
        in_specs=[_vmem_spec() for _ in args],
        out_specs=_vmem_spec(),
    )(*args)


@functools.partial(jax.jit, static_argnames=('mode', 'max_action'))
def actor_forward(state, params, mode, max_action):
    batch = state.shape[0]
    action_dim = params['w3'].shape[1]
    out_shape = (batch, action_dim)
    if mode == 'bn' or mode == 'bntn':
        kernel = functools.partial(_actor_fused_bn_kernel,
                                   max_action=float(max_action))
        return _fused_call(kernel, out_shape,
                           state,
                           params['w1'], params['bn1'],
                           params['w2'], params['bn2'],
                           params['w3'], params['b3'])
    kernel = functools.partial(_actor_fused_plain_kernel,
                               max_action=float(max_action))
    return _fused_call(kernel, out_shape,
                       state,
                       params['w1'], params['b1'],
                       params['w2'], params['b2'],
                       params['w3'], params['b3'])


# ---------------------------------------------------------------- Actor ------

class ActorPallas:
    """JAX/Pallas port of the PyTorch Actor module (single fused kernel)."""

    def __init__(self, state_dimension, action_dimension, max_action, key):
        self.max_action = float(max_action)

        def init_linear(key, fan_in, fan_out):
            # PyTorch nn.Linear default init: U(-1/sqrt(fan_in), 1/sqrt(fan_in))
            kw, kb = jax.random.split(key)
            bound = 1.0 / jnp.sqrt(jnp.float32(fan_in))
            w = jax.random.uniform(kw, (fan_in, fan_out), jnp.float32,
                                   -bound, bound)          # stored (in, out)
            b = jax.random.uniform(kb, (1, fan_out), jnp.float32, -bound, bound)
            return w, b

        k1, k2, k3 = jax.random.split(key, 3)
        w1, b1 = init_linear(k1, state_dimension, 400)
        w2, b2 = init_linear(k2, 400, 300)
        w3, b3 = init_linear(k3, 300, action_dimension)
        # BatchNorm1d params packed as (2, F): row 0 = gamma (1), row 1 = beta (0).
        bn1 = jnp.concatenate(
            [jnp.ones((1, 400), jnp.float32), jnp.zeros((1, 400), jnp.float32)], 0)
        bn2 = jnp.concatenate(
            [jnp.ones((1, 300), jnp.float32), jnp.zeros((1, 300), jnp.float32)], 0)
        self.params = dict(w1=w1, b1=b1, w2=w2, b2=b2, w3=w3, b3=b3,
                           bn1=bn1, bn2=bn2)

    def __call__(self, state, mode):
        return actor_forward(state, self.params, mode, self.max_action)


# ----------------------------------------------------------------- main ------

if __name__ == "__main__":
    key = jax.random.PRNGKey(0)
    k_params, k_state = jax.random.split(key)

    batch = 8          # multiple of the f32 sublane tile (8)
    state_dim = 16
    action_dim = 4
    max_action = 2.0

    actor = ActorPallas(state_dim, action_dim, max_action, k_params)
    state = jax.random.normal(k_state, (batch, state_dim), jnp.float32)

    out_plain = actor(state, mode='none')
    out_bn = actor(state, mode='bn')
    jax.block_until_ready(out_plain)
    jax.block_until_ready(out_bn)

    assert out_plain.shape == (batch, action_dim)
    assert out_bn.shape == (batch, action_dim)
    assert bool(jnp.all(jnp.abs(out_plain) <= max_action + 1e-5))
    assert bool(jnp.all(jnp.abs(out_bn) <= max_action + 1e-5))
    assert bool(jnp.all(jnp.isfinite(out_plain)))
    assert bool(jnp.all(jnp.isfinite(out_bn)))

    print("KERNEL_OK")
</pallas_src>

<mosaic_0001>
module attributes {stable_mosaic.version = 11 : i64} {
  func.func @_actor_fused_plain_kernel(%arg0: memref<8x16xf32, #tpu.memory_space<vmem>>, %arg1: memref<16x400xf32, #tpu.memory_space<vmem>>, %arg2: memref<1x400xf32, #tpu.memory_space<vmem>>, %arg3: memref<400x300xf32, #tpu.memory_space<vmem>>, %arg4: memref<1x300xf32, #tpu.memory_space<vmem>>, %arg5: memref<300x4xf32, #tpu.memory_space<vmem>>, %arg6: memref<1x4xf32, #tpu.memory_space<vmem>>, %arg7: memref<8x4xf32, #tpu.memory_space<vmem>>) attributes {dimension_semantics = [], scalar_prefetch = 0 : i64, scratch_operands = 0 : i64, tpu.core_type = #tpu.core_type<tc>} {
    %c0 = arith.constant 0 : index
    %c0_0 = arith.constant 0 : index
    %0 = vector.load %arg0[%c0, %c0_0] : memref<8x16xf32, #tpu.memory_space<vmem>>, vector<8x16xf32>
    %c0_1 = arith.constant 0 : index
    %c0_2 = arith.constant 0 : index
    %1 = vector.load %arg1[%c0_1, %c0_2] : memref<16x400xf32, #tpu.memory_space<vmem>>, vector<16x400xf32>
    %cst = arith.constant dense<0.000000e+00> : vector<8x400xf32>
    %2 = tpu.matmul %0, %1, %cst {dimension_numbers = #tpu.dot_dimension_numbers<[1], [0], [0], [1], [0, 0, 1, 1], [], []>} : vector<8x16xf32>, vector<16x400xf32>, vector<8x400xf32> -> vector<8x400xf32>
    %c0_3 = arith.constant 0 : index
    %c0_4 = arith.constant 0 : index
    %3 = vector.load %arg2[%c0_3, %c0_4] : memref<1x400xf32, #tpu.memory_space<vmem>>, vector<1x400xf32>
    %4 = vector.broadcast %3 : vector<1x400xf32> to vector<8x400xf32>
    %5 = arith.addf %2, %4 : vector<8x400xf32>
    %cst_5 = arith.constant 0.000000e+00 : f32
    %6 = vector.broadcast %cst_5 : f32 to vector<8x400xf32>
    %7 = arith.maximumf %5, %6 : vector<8x400xf32>
    %c0_6 = arith.constant 0 : index
    %c0_7 = arith.constant 0 : index
    %8 = vector.load %arg3[%c0_6, %c0_7] : memref<400x300xf32, #tpu.memory_space<vmem>>, vector<400x300xf32>
    %cst_8 = arith.constant dense<0.000000e+00> : vector<8x300xf32>
    %9 = tpu.matmul %7, %8, %cst_8 {dimension_numbers = #tpu.dot_dimension_numbers<[1], [0], [0], [1], [0, 0, 1, 1], [], []>} : vector<8x400xf32>, vector<400x300xf32>, vector<8x300xf32> -> vector<8x300xf32>
    %c0_9 = arith.constant 0 : index
    %c0_10 = arith.constant 0 : index
    %10 = vector.load %arg4[%c0_9, %c0_10] : memref<1x300xf32, #tpu.memory_space<vmem>>, vector<1x300xf32>
    %11 = vector.broadcast %10 : vector<1x300xf32> to vector<8x300xf32>
    %12 = arith.addf %9, %11 : vector<8x300xf32>
    %cst_11 = arith.constant 0.000000e+00 : f32
    %13 = vector.broadcast %cst_11 : f32 to vector<8x300xf32>
    %14 = arith.maximumf %12, %13 : vector<8x300xf32>
    %c0_12 = arith.constant 0 : index
    %c0_13 = arith.constant 0 : index
    %15 = vector.load %arg5[%c0_12, %c0_13] : memref<300x4xf32, #tpu.memory_space<vmem>>, vector<300x4xf32>
    %cst_14 = arith.constant dense<0.000000e+00> : vector<8x4xf32>
    %16 = tpu.matmul %14, %15, %cst_14 {dimension_numbers = #tpu.dot_dimension_numbers<[1], [0], [0], [1], [0, 0, 1, 1], [], []>} : vector<8x300xf32>, vector<300x4xf32>, vector<8x4xf32> -> vector<8x4xf32>
    %c0_15 = arith.constant 0 : index
    %c0_16 = arith.constant 0 : index
    %17 = vector.load %arg6[%c0_15, %c0_16] : memref<1x4xf32, #tpu.memory_space<vmem>>, vector<1x4xf32>
    %18 = vector.broadcast %17 : vector<1x4xf32> to vector<8x4xf32>
    %19 = arith.addf %16, %18 : vector<8x4xf32>
    %20 = math.tanh %19 : vector<8x4xf32>
    %cst_17 = arith.constant 2.000000e+00 : f32
    %21 = vector.broadcast %cst_17 : f32 to vector<8x4xf32>
    %22 = arith.mulf %21, %20 : vector<8x4xf32>
    %c0_18 = arith.constant 0 : index
    %c0_19 = arith.constant 0 : index
    %23 = vector.load %arg7[%c0_18, %c0_19] : memref<8x4xf32, #tpu.memory_space<vmem>>, vector<8x4xf32>
    tpu.vector_store %arg7[%c0_18, %c0_19], %22 {strides = array<i32>} : memref<8x4xf32, #tpu.memory_space<vmem>>, vector<8x4xf32>,
    return
  }
}

</mosaic_0001>

<llo_original>
// kernel: actor_forward.1
$region0: #{actor_forward.1}
  #allocation0 [shape = 'u32[]', space=smem, size = 0x4, offset = 0x4, fixed_abs, tag = 'smem constant byte address 0x4 - core index']
  #allocation1 [shape = 'u32[144,128]{1,0:T(1,128)}', space=vmem, size = 0x12000, scoped, tag = 'internal scratch']
  %s0 = inlined_call_operand.vmem [shape: f32[8,16], index: 0, kind: input, shape index: {}]
  %s1 = inlined_call_operand.vmem [shape: f32[16,400], index: 1, kind: input, shape index: {}]
  %s2 = inlined_call_operand.vmem [shape: f32[1,400], index: 2, kind: input, shape index: {}]
  %s3 = inlined_call_operand.hbm [shape: f32[400,300], index: 3, kind: input, shape index: {}]
  %s4 = inlined_call_operand.vmem [shape: f32[1,300], index: 4, kind: input, shape index: {}]
  %s5 = inlined_call_operand.vmem [shape: f32[300,4], index: 5, kind: input, shape index: {}]
  %s6 = inlined_call_operand.vmem [shape: f32[1,4], index: 6, kind: input, shape index: {}]
  %s7 = inlined_call_operand.vmem [shape: f32[8,4], index: 7, kind: output, shape index: {}]
  %s8 = sld [smem:[#allocation0]]
  $region42: #{actor_forward.1} parent=0
    _
  %s10 = ssub.s32 1, %s8
  %s11 = scalar_select 0, %s10, %s8
  $region1: #{actor_forward.1} parent=0
    #allocation2 [shape = 'u8[614400]{0}', space=vmem, size = 0x96000, scoped, tag = 'input window, operand 3, single buffered']
    #allocation3 [shape = 's32[1]{0}', space=sflag, size = 0x4, scoped, tag = 'scoped memory for actor_forward.1']
    %12 = vsyncpa [#allocation3], 0
    // Predicated region
    $region2: #{actor_forward.1} parent=1 // pred_check
      _
    $region3: #{actor_forward.1} parent=1 // pred_check_branch
      %14 = sbr.rel (0) target = $region5
    $region4: #{actor_forward.1} parent=1 // pred_region
      _
    $region5: #{actor_forward.1} parent=1 // pred_fallthru
      _
    // Predicated region
    $region6: #{actor_forward.1} parent=1 // pred_check
      _
    $region7: #{actor_forward.1} parent=1 // pred_check_branch
      %16 = sbr.rel (0) target = $region9
    $region8: #{actor_forward.1} parent=1 // pred_region
      _
    $region9: #{actor_forward.1} parent=1 // pred_fallthru
      _
    // Predicated region
    $region10: #{actor_forward.1} parent=1 // pred_check
      _
    $region11: #{actor_forward.1} parent=1 // pred_check_branch
      %18 = sbr.rel (0) target = $region13
    $region12: #{actor_forward.1} parent=1 // pred_region
      _
    $region13: #{actor_forward.1} parent=1 // pred_fallthru
      _
    // Predicated region
    $region14: #{actor_forward.1} parent=1 // pred_check
      _
    $region15: #{actor_forward.1} parent=1 // pred_check_branch
      %20 = sbr.rel (0) target = $region17
    $region16: #{actor_forward.1} parent=1 // pred_region
      %s22 = ssub.s32 19200, 19200
      %23 = vsyncadd [#allocation3], %s22
      %s24 = sshll.u32 [#allocation2], 4
      %s25 = int_to_ptr.vmem [resolvable:$true] %s24
      %30 = dma.hbm_to_vmem [thread:$0]  %s3, 19200, %s25, [#allocation3], 384, 384, 24
    $region17: #{actor_forward.1} parent=1 // pred_fallthru
      _
    // Predicated region
    $region18: #{actor_forward.1} parent=1 // pred_check
      _
    $region19: #{actor_forward.1} parent=1 // pred_check_branch
      %32 = sbr.rel (0) target = $region21
    $region20: #{actor_forward.1} parent=1 // pred_region
      _
    $region21: #{actor_forward.1} parent=1 // pred_fallthru
      _
    // Predicated region
    $region22: #{actor_forward.1} parent=1 // pred_check
      _
    $region23: #{actor_forward.1} parent=1 // pred_check_branch
      %34 = sbr.rel (0) target = $region25
    $region24: #{actor_forward.1} parent=1 // pred_region
      _
    $region25: #{actor_forward.1} parent=1 // pred_fallthru
      _
    // Predicated region
    $region26: #{actor_forward.1} parent=1 // pred_check
      _
    $region27: #{actor_forward.1} parent=1 // pred_check_branch
      %36 = sbr.rel (0) target = $region29
    $region28: #{actor_forward.1} parent=1 // pred_region
      _
    $region29: #{actor_forward.1} parent=1 // pred_fallthru
      _
    // Predicated region
    $region30: #{actor_forward.1} parent=1 // pred_check
      _
    $region31: #{actor_forward.1} parent=1 // pred_check_branch
      %38 = sbr.rel (0) target = $region33
    $region32: #{actor_forward.1} parent=1 // pred_region
      %39 = dma.done [#allocation3], 19200
    $region33: #{actor_forward.1} parent=1 // pred_fallthru
      _
    %v40 = vld [vmem:[%s0] sm:$0xff]
    %v41 = vld [vmem:[%s1] sm:$0xff]
    %v42 = vld [vmem:[%s1 + $0x8] sm:$0xff]
    %v43 = vld [vmem:[%s1 + $0x10] sm:$0xff]
    %v44 = vld [vmem:[%s1 + $0x18] sm:$0xff]
    %v45 = vld [vmem:[%s1 + $0x20] sm:$0xff]
    %v46 = vld [vmem:[%s1 + $0x28] sm:$0xff]
    %v47 = vld [vmem:[%s1 + $0x30] sm:$0xff]
    %v48 = vld [vmem:[%s1 + $0x38] sm:$0xff]
    %v49 = vld [vmem:[%s2] sm:$0xf]
    %v51 = vlaneseq
    %v52 = vshrl.u32 %v51, 7
    %v53 = vsub.s32 0, %v52
    %v54 = vrot.slane %v49, %v53
    %v55 = vlaneseq
    %v56 = vshrl.u32 %v55, 7
    %v57 = vsub.s32 1, %v56
    %v58 = vrot.slane %v49, %v57
    %v59 = vlaneseq
    %v60 = vshrl.u32 %v59, 7
    %v61 = vsub.s32 2, %v60
    %v62 = vrot.slane %v49, %v61
    %v63 = vlaneseq
    %v64 = vshrl.u32 %v63, 7
    %v65 = vsub.s32 3, %v64
    %v66 = vrot.slane %v49, %v65
    %vm71 = vcmask 130048
    %v73 = vsel %vm71, %v40, 0
    %75 = vmatprep.subr.mxu0 %v42
    %76 = vmatpush1.msra.mxu0 %v41
    %77 = vmatprep.subr.mxu0 %v46
    %78 = vmatpush1.msra.mxu0 %v45
    %79 = vmatprep.subr.mxu0 0.0
    %80 = vmatpush1.msra.mxu0 0.0
    %81 = vmatprep.subr.mxu0 0.0
    %82 = vmatpush1.msra.mxu0 0.0
    %83 = vmatprep.subr.mxu0 0.0
    %84 = vmatpush1.msra.mxu0 0.0
    %85 = vmatprep.subr.mxu0 0.0
    %86 = vmatpush1.msra.mxu0 0.0
    %87 = vmatprep.subr.mxu0 0.0
    %88 = vmatpush1.msra.mxu0 0.0
    %89 = vmatprep.subr.mxu0 0.0
    %90 = vmatpush1.msra.mxu0 0.0
    %91 = vmatprep.subr.mxu0 0.0
    %92 = vmatpush1.msra.mxu0 0.0
    %93 = vmatprep.subr.mxu0 0.0
    %94 = vmatpush1.msra.mxu0 0.0
    %95 = vmatprep.subr.mxu0 0.0
    %96 = vmatpush1.msra.mxu0 0.0
    %97 = vmatprep.subr.mxu0 0.0
    %98 = vmatpush1.msra.mxu0 0.0
    %99 = vmatprep.subr.mxu0 0.0
    %100 = vmatpush1.msra.mxu0 0.0
    %101 = vmatprep.subr.mxu0 0.0
    %102 = vmatpush1.msra.mxu0 0.0
    %103 = vmatprep.subr.mxu0 0.0
    %104 = vmatpush1.msra.mxu0 0.0
    %105 = vmatprep.subr.mxu0 0.0
    %106 = vmatpush1.msra.mxu0 0.0
    %107 = vmatprep.subr.mxu0 0.0
    %108 = vmatpush1.msra.mxu0 0.0
    %109 = vmatprep.subr.mxu0 0.0
    %110 = vmatpush1.msra.mxu0 0.0
    %111 = vmatprep.subr.mxu0 0.0
    %112 = vmatpush1.msra.mxu0 0.0
    %113 = vmatprep.subr.mxu0 0.0
    %114 = vmatpush1.msra.mxu0 0.0
    %115 = vmatprep.subr.mxu0 0.0
    %116 = vmatpush1.msra.mxu0 0.0
    %117 = vmatprep.subr.mxu0 0.0
    %118 = vmatpush1.msra.mxu0 0.0
    %119 = vmatprep.subr.mxu0 0.0
    %120 = vmatpush1.msra.mxu0 0.0
    %121 = vmatprep.subr.mxu0 0.0
    %122 = vmatpush1.msra.mxu0 0.0
    %123 = vmatprep.subr.mxu0 0.0
    %124 = vmatpush1.msra.mxu0 0.0
    %125 = vmatprep.subr.mxu0 0.0
    %126 = vmatpush1.msra.mxu0 0.0
    %127 = vmatprep.subr.mxu0 0.0
    %128 = vmatpush1.msra.mxu0 0.0
    %129 = vmatprep.subr.mxu0 0.0
    %130 = vmatpush1.msra.mxu0 0.0
    %131 = vmatprep.subr.mxu0 0.0
    %132 = vmatpush1.msra.mxu0 0.0
    %133 = vmatprep.subr.mxu0 0.0
    %134 = vmatpush1.msra.mxu0 0.0
    %135 = vmatprep.subr.mxu0 0.0
    %136 = vmatpush1.msra.mxu0 0.0
    %137 = vmatprep.subr.mxu0 0.0
    %138 = vmatpush1.msra.mxu0 0.0
    %139 = vmatprep.mubr.f32.mxu0 0.0
    %140 = vmatmul.mubr.f32.gmra.mrb[0].mxu0 %v73
    %v141 = vpop.f32.mrb[0].mxu0
    %v142 = vadd.f32 %v54, %v141
    %v143 = vpop.f32.mrb[0].mxu0
    %v144 = vadd.f32 %v58, %v143
    %145 = vdwg.mxu0
    %146 = vmatprep.subr.mxu0 %v44
    %147 = vmatpush1.msra.mxu0 %v43
    %148 = vmatprep.subr.mxu0 %v48
    %149 = vmatpush1.msra.mxu0 %v47
    %150 = vmatprep.subr.mxu0 0.0
    %151 = vmatpush1.msra.mxu0 0.0
    %152 = vmatprep.subr.mxu0 0.0
    %153 = vmatpush1.msra.mxu0 0.0
    %154 = vmatprep.subr.mxu0 0.0
    %155 = vmatpush1.msra.mxu0 0.0
    %156 = vmatprep.subr.mxu0 0.0
    %157 = vmatpush1.msra.mxu0 0.0
    %158 = vmatprep.subr.mxu0 0.0
    %159 = vmatpush1.msra.mxu0 0.0
    %160 = vmatprep.subr.mxu0 0.0
    %161 = vmatpush1.msra.mxu0 0.0
    %162 = vmatprep.subr.mxu0 0.0
    %163 = vmatpush1.msra.mxu0 0.0
    %164 = vmatprep.subr.mxu0 0.0
    %165 = vmatpush1.msra.mxu0 0.0
    %166 = vmatprep.subr.mxu0 0.0
    %167 = vmatpush1.msra.mxu0 0.0
    %168 = vmatprep.subr.mxu0 0.0
    %169 = vmatpush1.msra.mxu0 0.0
    %170 = vmatprep.subr.mxu0 0.0
    %171 = vmatpush1.msra.mxu0 0.0
    %172 = vmatprep.subr.mxu0 0.0
    %173 = vmatpush1.msra.mxu0 0.0
    %174 = vmatprep.subr.mxu0 0.0
    %175 = vmatpush1.msra.mxu0 0.0
    %176 = vmatprep.subr.mxu0 0.0
    %177 = vmatpush1.msra.mxu0 0.0
    %178 = vmatprep.subr.mxu0 0.0
    %179 = vmatpush1.msra.mxu0 0.0
    %180 = vmatprep.subr.mxu0 0.0
    %181 = vmatpush1.msra.mxu0 0.0
    %182 = vmatprep.subr.mxu0 0.0
    %183 = vmatpush1.msra.mxu0 0.0
    %184 = vmatprep.subr.mxu0 0.0
    %185 = vmatpush1.msra.mxu0 0.0
    %186 = vmatprep.subr.mxu0 0.0
    %187 = vmatpush1.msra.mxu0 0.0
    %188 = vmatprep.subr.mxu0 0.0
    %189 = vmatpush1.msra.mxu0 0.0
    %190 = vmatprep.subr.mxu0 0.0
    %191 = vmatpush1.msra.mxu0 0.0
    %192 = vmatprep.subr.mxu0 0.0
    %193 = vmatpush1.msra.mxu0 0.0
    %194 = vmatprep.subr.mxu0 0.0
    %195 = vmatpush1.msra.mxu0 0.0
    %196 = vmatprep.subr.mxu0 0.0
    %197 = vmatpush1.msra.mxu0 0.0
    %198 = vmatprep.subr.mxu0 0.0
    %199 = vmatpush1.msra.mxu0 0.0
    %200 = vmatprep.subr.mxu0 0.0
    %201 = vmatpush1.msra.mxu0 0.0
    %202 = vmatprep.subr.mxu0 0.0
    %203 = vmatpush1.msra.mxu0 0.0
    %204 = vmatprep.subr.mxu0 0.0
    %205 = vmatpush1.msra.mxu0 0.0
    %206 = vmatprep.subr.mxu0 0.0
    %207 = vmatpush1.msra.mxu0 0.0
    %208 = vmatprep.subr.mxu0 0.0
    %209 = vmatpush1.msra.mxu0 0.0
    %210 = vmatprep.mubr.f32.mxu0 0.0
    %211 = vmatmul.mubr.f32.gmra.mrb[0].mxu0 %v73
    %v212 = vpop.f32.mrb[0].mxu0
    %v213 = vadd.f32 %v62, %v212
    %v214 = vpop.f32.mrb[0].mxu0
    %v215 = vadd.f32 %v66, %v214
    %216 = vdwg.mxu0
    %v217 = vmax.f32 %v142, 0.0
    %v218 = vmax.f32 %v144, 0.0
    %v219 = vmax.f32 %v213, 0.0
    %v220 = vmax.f32 %v215, 0.0
    %v221 = vld [vmem:[#allocation2] sm:$0xff]
    %v222 = vld [vmem:[#allocation2 + $0x8] sm:$0xff]
    %v223 = vld [vmem:[#allocation2 + $0x10] sm:$0xff]
    %v224 = vld [vmem:[#allocation2 + $0x18] sm:$0xff]
    %v225 = vld [vmem:[#allocation2 + $0x20] sm:$0xff]
    %v226 = vld [vmem:[#allocation2 + $0x28] sm:$0xff]
    %v227 = vld [vmem:[#allocation2 + $0x30] sm:$0xff]
    %v228 = vld [vmem:[#allocation2 + $0x38] sm:$0xff]
    %v229 = vld [vmem:[#allocation2 + $0x40] sm:$0xff]
    %v230 = vld [vmem:[#allocation2 + $0x48] sm:$0xff]
    %v231 = vld [vmem:[#allocation2 + $0x50] sm:$0xff]
    %v232 = vld [vmem:[#allocation2 + $0x58] sm:$0xff]
    %v233 = vld [vmem:[#allocation2 + $0x60] sm:$0xff]
    %v234 = vld [vmem:[#allocation2 + $0x68] sm:$0xff]
    %v235 = vld [vmem:[#allocation2 + $0x70] sm:$0xff]
    %v236 = vld [vmem:[#allocation2 + $0x78] sm:$0xff]
    %v237 = vld [vmem:[#allocation2 + $0x80] sm:$0xff]
    %v238 = vld [vmem:[#allocation2 + $0x88] sm:$0xff]
    %v239 = vld [vmem:[#allocation2 + $0x90] sm:$0xff]
    %v240 = vld [vmem:[#allocation2 + $0x98] sm:$0xff]
    %v241 = vld [vmem:[#allocation2 + $0xa0] sm:$0xff]
    %v242 = vld [vmem:[#allocation2 + $0xa8] sm:$0xff]
    %v243 = vld [vmem:[#allocation2 + $0xb0] sm:$0xff]
    %v244 = vld [vmem:[#allocation2 + $0xb8] sm:$0xff]
    %v245 = vld [vmem:[#allocation2 + $0xc0] sm:$0xff]
    %v246 = vld [vmem:[#allocation2 + $0xc8] sm:$0xff]
    %v247 = vld [vmem:[#allocation2 + $0xd0] sm:$0xff]
    %v248 = vld [vmem:[#allocation2 + $0xd8] sm:$0xff]
    %v249 = vld [vmem:[#allocation2 + $0xe0] sm:$0xff]
    %v250 = vld [vmem:[#allocation2 + $0xe8] sm:$0xff]
    %v251 = vld [vmem:[#allocation2 + $0xf0] sm:$0xff]
    %v252 = vld [vmem:[#allocation2 + $0xf8] sm:$0xff]
    %v253 = vld [vmem:[#allocation2 + $0x100] sm:$0xff]
    %v254 = vld [vmem:[#allocation2 + $0x108] sm:$0xff]
    %v255 = vld [vmem:[#allocation2 + $0x110] sm:$0xff]
    %v256 = vld [vmem:[#allocation2 + $0x118] sm:$0xff]
    %v257 = vld [vmem:[#allocation2 + $0x120] sm:$0xff]
    %v258 = vld [vmem:[#allocation2 + $0x128] sm:$0xff]
    %v259 = vld [vmem:[#allocation2 + $0x130] sm:$0xff]
    %v260 = vld [vmem:[#allocation2 + $0x138] sm:$0xff]
    %v261 = vld [vmem:[#allocation2 + $0x140] sm:$0xff]
    %v262 = vld [vmem:[#allocation2 + $0x148] sm:$0xff]
    %v263 = vld [vmem:[#allocation2 + $0x150] sm:$0xff]
    %v264 = vld [vmem:[#allocation2 + $0x158] sm:$0xff]
    %v265 = vld [vmem:[#allocation2 + $0x160] sm:$0xff]
    %v266 = vld [vmem:[#allocation2 + $0x168] sm:$0xff]
    %v267 = vld [vmem:[#allocation2 + $0x170] sm:$0xff]
    %v268 = vld [vmem:[#allocation2 + $0x178] sm:$0xff]
    %v269 = vld [vmem:[#allocation2 + $0x180] sm:$0xff]
    %v270 = vld [vmem:[#allocation2 + $0x188] sm:$0xff]
    %v271 = vld [vmem:[#allocation2 + $0x190] sm:$0xff]
    %v272 = vld [vmem:[#allocation2 + $0x198] sm:$0xff]
    %v273 = vld [vmem:[#allocation2 + $0x1a0] sm:$0xff]
    %v274 = vld [vmem:[#allocation2 + $0x1a8] sm:$0xff]
    %v275 = vld [vmem:[#allocation2 + $0x1b0] sm:$0xff]
    %v276 = vld [vmem:[#allocation2 + $0x1b8] sm:$0xff]
    %v277 = vld [vmem:[#allocation2 + $0x1c0] sm:$0xff]
    %v278 = vld [vmem:[#allocation2 + $0x1c8] sm:$0xff]
    %v279 = vld [vmem:[#allocation2 + $0x1d0] sm:$0xff]
    %v280 = vld [vmem:[#allocation2 + $0x1d8] sm:$0xff]
    %v281 = vld [vmem:[#allocation2 + $0x1e0] sm:$0xff]
    %v282 = vld [vmem:[#allocation2 + $0x1e8] sm:$0xff]
    %v283 = vld [vmem:[#allocation2 + $0x1f0] sm:$0xff]
    %v284 = vld [vmem:[#allocation2 + $0x1f8] sm:$0xff]
    %v285 = vld [vmem:[#allocation2 + $0x200] sm:$0xff]
    %v286 = vld [vmem:[#allocation2 + $0x208] sm:$0xff]
    %v287 = vld [vmem:[#allocation2 + $0x210] sm:$0xff]
    %v288 = vld [vmem:[#allocation2 + $0x218] sm:$0xff]
    %v289 = vld [vmem:[#allocation2 + $0x220] sm:$0xff]
    %v290 = vld [vmem:[#allocation2 + $0x228] sm:$0xff]
    %v291 = vld [vmem:[#allocation2 + $0x230] sm:$0xff]
    %v292 = vld [vmem:[#allocation2 + $0x238] sm:$0xff]
    %v293 = vld [vmem:[#allocation2 + $0x240] sm:$0xff]
    %v294 = vld [vmem:[#allocation2 + $0x248] sm:$0xff]
    %v295 = vld [vmem:[#allocation2 + $0x250] sm:$0xff]
    %v296 = vld [vmem:[#allocation2 + $0x258] sm:$0xff]
    %v297 = vld [vmem:[#allocation2 + $0x260] sm:$0xff]
    %v298 = vld [vmem:[#allocation2 + $0x268] sm:$0xff]
    %v299 = vld [vmem:[#allocation2 + $0x270] sm:$0xff]
    %v300 = vld [vmem:[#allocation2 + $0x278] sm:$0xff]
    %v301 = vld [vmem:[#allocation2 + $0x280] sm:$0xff]
    %v302 = vld [vmem:[#allocation2 + $0x288] sm:$0xff]
    %v303 = vld [vmem:[#allocation2 + $0x290] sm:$0xff]
    %v304 = vld [vmem:[#allocation2 + $0x298] sm:$0xff]
    %v305 = vld [vmem:[#allocation2 + $0x2a0] sm:$0xff]
    %v306 = vld [vmem:[#allocation2 + $0x2a8] sm:$0xff]
    %v307 = vld [vmem:[#allocation2 + $0x2b0] sm:$0xff]
    %v308 = vld [vmem:[#allocation2 + $0x2b8] sm:$0xff]
    %v309 = vld [vmem:[#allocation2 + $0x2c0] sm:$0xff]
    %v310 = vld [vmem:[#allocation2 + $0x2c8] sm:$0xff]
    %v311 = vld [vmem:[#allocation2 + $0x2d0] sm:$0xff]
    %v312 = vld [vmem:[#allocation2 + $0x2d8] sm:$0xff]
    %v313 = vld [vmem:[#allocation2 + $0x2e0] sm:$0xff]
    %v314 = vld [vmem:[#allocation2 + $0x2e8] sm:$0xff]
    %v315 = vld [vmem:[#allocation2 + $0x2f0] sm:$0xff]
    %v316 = vld [vmem:[#allocation2 + $0x2f8] sm:$0xff]
    %v317 = vld [vmem:[#allocation2 + $0x300] sm:$0xff]
    %v318 = vld [vmem:[#allocation2 + $0x308] sm:$0xff]
    %v319 = vld [vmem:[#allocation2 + $0x310] sm:$0xff]
    %v320 = vld [vmem:[#allocation2 + $0x318] sm:$0xff]
    %v321 = vld [vmem:[#allocation2 + $0x320] sm:$0xff]
    %v322 = vld [vmem:[#allocation2 + $0x328] sm:$0xff]
    %v323 = vld [vmem:[#allocation2 + $0x330] sm:$0xff]
    %v324 = vld [vmem:[#allocation2 + $0x338] sm:$0xff]
    %v325 = vld [vmem:[#allocation2 + $0x340] sm:$0xff]
    %v326 = vld [vmem:[#allocation2 + $0x348] sm:$0xff]
    %v327 = vld [vmem:[#allocation2 + $0x350] sm:$0xff]
    %v328 = vld [vmem:[#allocation2 + $0x358] sm:$0xff]
    %v329 = vld [vmem:[#allocation2 + $0x360] sm:$0xff]
    %v330 = vld [vmem:[#allocation2 + $0x368] sm:$0xff]
    %v331 = vld [vmem:[#allocation2 + $0x370] sm:$0xff]
    %v332 = vld [vmem:[#allocation2 + $0x378] sm:$0xff]
    %v333 = vld [vmem:[#allocation2 + $0x380] sm:$0xff]
    %v334 = vld [vmem:[#allocation2 + $0x388] sm:$0xff]
    %v335 = vld [vmem:[#allocation2 + $0x390] sm:$0xff]
    %v336 = vld [vmem:[#allocation2 + $0x398] sm:$0xff]
    %v337 = vld [vmem:[#allocation2 + $0x3a0] sm:$0xff]
    %v338 = vld [vmem:[#allocation2 + $0x3a8] sm:$0xff]
    %v339 = vld [vmem:[#allocation2 + $0x3b0] sm:$0xff]
    %v340 = vld [vmem:[#allocation2 + $0x3b8] sm:$0xff]
    %v341 = vld [vmem:[#allocation2 + $0x3c0] sm:$0xff]
    %v342 = vld [vmem:[#allocation2 + $0x3c8] sm:$0xff]
    %v343 = vld [vmem:[#allocation2 + $0x3d0] sm:$0xff]
    %v344 = vld [vmem:[#allocation2 + $0x3d8] sm:$0xff]
    %v345 = vld [vmem:[#allocation2 + $0x3e0] sm:$0xff]
    %v346 = vld [vmem:[#allocation2 + $0x3e8] sm:$0xff]
    %v347 = vld [vmem:[#allocation2 + $0x3f0] sm:$0xff]
    %v348 = vld [vmem:[#allocation2 + $0x3f8] sm:$0xff]
    %v349 = vld [vmem:[#allocation2 + $0x400] sm:$0xff]
    %v350 = vld [vmem:[#allocation2 + $0x408] sm:$0xff]
    %v351 = vld [vmem:[#allocation2 + $0x410] sm:$0xff]
    %v352 = vld [vmem:[#allocation2 + $0x418] sm:$0xff]
    %v353 = vld [vmem:[#allocation2 + $0x420] sm:$0xff]
    %v354 = vld [vmem:[#allocation2 + $0x428] sm:$0xff]
    %v355 = vld [vmem:[#allocation2 + $0x430] sm:$0xff]
    %v356 = vld [vmem:[#allocation2 + $0x438] sm:$0xff]
    %v357 = vld [vmem:[#allocation2 + $0x440] sm:$0xff]
    %v358 = vld [vmem:[#allocation2 + $0x448] sm:$0xff]
    %v359 = vld [vmem:[#allocation2 + $0x450] sm:$0xff]
    %v360 = vld [vmem:[#allocation2 + $0x458] sm:$0xff]
    %v361 = vld [vmem:[#allocation2 + $0x460] sm:$0xff]
    %v362 = vld [vmem:[#allocation2 + $0x468] sm:$0xff]
    %v363 = vld [vmem:[#allocation2 + $0x470] sm:$0xff]
    %v364 = vld [vmem:[#allocation2 + $0x478] sm:$0xff]
    %v365 = vld [vmem:[#allocation2 + $0x480] sm:$0xff]
    %v366 = vld [vmem:[#allocation2 + $0x488] sm:$0xff]
    %v367 = vld [vmem:[#allocation2 + $0x490] sm:$0xff]
    %v368 = vld [vmem:[#allocation2 + $0x498] sm:$0xff]
    %v369 = vld [vmem:[#allocation2 + $0x4a0] sm:$0xff]
    %v370 = vld [vmem:[#allocation2 + $0x4a8] sm:$0xff]
    %v371 = vld [vmem:[%s4] sm:$0x7]
    %v373 = vlaneseq
    %v374 = vshrl.u32 %v373, 7
    %v375 = vsub.s32 0, %v374
    %v376 = vrot.slane %v371, %v375
    %v377 = vlaneseq
    %v378 = vshrl.u32 %v377, 7
    %v379 = vsub.s32 1, %v378
    %v380 = vrot.slane %v371, %v379
    %v381 = vlaneseq
    %v382 = vshrl.u32 %v381, 7
    %v383 = vsub.s32 2, %v382
    %v384 = vrot.slane %v371, %v383
    %v389 = vsel %vm71, %v220, 0
    %391 = vmatprep.subr.mxu0 %v222
    %392 = vmatpush1.msra.mxu0 %v221
    %393 = vmatprep.subr.mxu0 %v225
    %394 = vmatpush1.msra.mxu0 %v224
    %395 = vmatprep.subr.mxu0 %v228
    %396 = vmatpush1.msra.mxu0 %v227
    %397 = vmatprep.subr.mxu0 %v231
    %398 = vmatpush1.msra.mxu0 %v230
    %399 = vmatprep.subr.mxu0 %v234
    %400 = vmatpush1.msra.mxu0 %v233
    %401 = vmatprep.subr.mxu0 %v237
    %402 = vmatpush1.msra.mxu0 %v236
    %403 = vmatprep.subr.mxu0 %v240
    %404 = vmatpush1.msra.mxu0 %v239
    %405 = vmatprep.subr.mxu0 %v243
    %406 = vmatpush1.msra.mxu0 %v242
    %407 = vmatprep.subr.mxu0 %v246
    %408 = vmatpush1.msra.mxu0 %v245
    %409 = vmatprep.subr.mxu0 %v249
    %410 = vmatpush1.msra.mxu0 %v248
    %411 = vmatprep.subr.mxu0 %v252
    %412 = vmatpush1.msra.mxu0 %v251
    %413 = vmatprep.subr.mxu0 %v255
    %414 = vmatpush1.msra.mxu0 %v254
    %415 = vmatprep.subr.mxu0 %v258
    %416 = vmatpush1.msra.mxu0 %v257
    %417 = vmatprep.subr.mxu0 %v261
    %418 = vmatpush1.msra.mxu0 %v260
    %419 = vmatprep.subr.mxu0 %v264
    %420 = vmatpush1.msra.mxu0 %v263
    %421 = vmatprep.subr.mxu0 %v267
    %422 = vmatpush1.msra.mxu0 %v266
    %423 = vmatprep.subr.mxu0 %v270
    %424 = vmatpush1.msra.mxu0 %v269
    %425 = vmatprep.subr.mxu0 %v273
    %426 = vmatpush1.msra.mxu0 %v272
    %427 = vmatprep.subr.mxu0 %v276
    %428 = vmatpush1.msra.mxu0 %v275
    %429 = vmatprep.subr.mxu0 %v279
    %430 = vmatpush1.msra.mxu0 %v278
    %431 = vmatprep.subr.mxu0 %v282
    %432 = vmatpush1.msra.mxu0 %v281
    %433 = vmatprep.subr.mxu0 %v285
    %434 = vmatpush1.msra.mxu0 %v284
    %435 = vmatprep.subr.mxu0 %v288
    %436 = vmatpush1.msra.mxu0 %v287
    %437 = vmatprep.subr.mxu0 %v291
    %438 = vmatpush1.msra.mxu0 %v290
    %439 = vmatprep.subr.mxu0 %v294
    %440 = vmatpush1.msra.mxu0 %v293
    %441 = vmatprep.subr.mxu0 %v297
    %442 = vmatpush1.msra.mxu0 %v296
    %443 = vmatprep.subr.mxu0 %v300
    %444 = vmatpush1.msra.mxu0 %v299
    %445 = vmatprep.subr.mxu0 %v303
    %446 = vmatpush1.msra.mxu0 %v302
    %447 = vmatprep.subr.mxu0 %v306
    %448 = vmatpush1.msra.mxu0 %v305
    %449 = vmatprep.subr.mxu0 %v309
    %450 = vmatpush1.msra.mxu0 %v308
    %451 = vmatprep.subr.mxu0 %v312
    %452 = vmatpush1.msra.mxu0 %v311
    %453 = vmatprep.subr.mxu0 %v315
    %454 = vmatpush1.msra.mxu0 %v314
    %455 = vmatprep.mubr.f32.mxu0 %v218
    %456 = vmatmul.mubr.f32.gmra.mrb[0].mxu0 %v217
    %v457 = vpop.f32.mrb[0].mxu0
    %v458 = vadd.f32 %v376, %v457
    %v459 = vpop.f32.mrb[0].mxu0
    %v460 = vadd.f32 %v380, %v459
    %461 = vdwg.mxu0
    %462 = vmatprep.subr.mxu0 %v318
    %463 = vmatpush1.msra.mxu0 %v317
    %464 = vmatprep.subr.mxu0 %v321
    %465 = vmatpush1.msra.mxu0 %v320
    %466 = vmatprep.subr.mxu0 %v324
    %467 = vmatpush1.msra.mxu0 %v323
    %468 = vmatprep.subr.mxu0 %v327
    %469 = vmatpush1.msra.mxu0 %v326
    %470 = vmatprep.subr.mxu0 %v330
    %471 = vmatpush1.msra.mxu0 %v329
    %472 = vmatprep.subr.mxu0 %v333
    %473 = vmatpush1.msra.mxu0 %v332
    %474 = vmatprep.subr.mxu0 %v336
    %475 = vmatpush1.msra.mxu0 %v335
    %476 = vmatprep.subr.mxu0 %v339
    %477 = vmatpush1.msra.mxu0 %v338
    %478 = vmatprep.subr.mxu0 %v342
    %479 = vmatpush1.msra.mxu0 %v341
    %480 = vmatprep.subr.mxu0 %v345
    %481 = vmatpush1.msra.mxu0 %v344
    %482 = vmatprep.subr.mxu0 %v348
    %483 = vmatpush1.msra.mxu0 %v347
    %484 = vmatprep.subr.mxu0 %v351
    %485 = vmatpush1.msra.mxu0 %v350
    %486 = vmatprep.subr.mxu0 %v354
    %487 = vmatpush1.msra.mxu0 %v353
    %488 = vmatprep.subr.mxu0 %v357
    %489 = vmatpush1.msra.mxu0 %v356
    %490 = vmatprep.subr.mxu0 %v360
    %491 = vmatpush1.msra.mxu0 %v359
    %492 = vmatprep.subr.mxu0 %v363
    %493 = vmatpush1.msra.mxu0 %v362
    %494 = vmatprep.subr.mxu0 %v366
    %495 = vmatpush1.msra.mxu0 %v365
    %496 = vmatprep.subr.mxu0 %v369
    %497 = vmatpush1.msra.mxu0 %v368
    %498 = vmatprep.subr.mxu0 0.0
    %499 = vmatpush1.msra.mxu0 0.0
    %500 = vmatprep.subr.mxu0 0.0
    %501 = vmatpush1.msra.mxu0 0.0
    %502 = vmatprep.subr.mxu0 0.0
    %503 = vmatpush1.msra.mxu0 0.0
    %504 = vmatprep.subr.mxu0 0.0
    %505 = vmatpush1.msra.mxu0 0.0
    %506 = vmatprep.subr.mxu0 0.0
    %507 = vmatpush1.msra.mxu0 0.0
    %508 = vmatprep.subr.mxu0 0.0
    %509 = vmatpush1.msra.mxu0 0.0
    %510 = vmatprep.subr.mxu0 0.0
    %511 = vmatpush1.msra.mxu0 0.0
    %512 = vmatprep.subr.mxu0 0.0
    %513 = vmatpush1.msra.mxu0 0.0
    %514 = vmatprep.subr.mxu0 0.0
    %515 = vmatpush1.msra.mxu0 0.0
    %516 = vmatprep.subr.mxu0 0.0
    %517 = vmatpush1.msra.mxu0 0.0
    %518 = vmatprep.subr.mxu0 0.0
    %519 = vmatpush1.msra.mxu0 0.0
    %520 = vmatprep.subr.mxu0 0.0
    %521 = vmatpush1.msra.mxu0 0.0
    %522 = vmatprep.subr.mxu0 0.0
    %523 = vmatpush1.msra.mxu0 0.0
    %524 = vmatprep.subr.mxu0 0.0
    %525 = vmatpush1.msra.mxu0 0.0
    %526 = vmatprep.mubr.f32.mxu0 %v389
    %527 = vmatmul.mubr.f32.gmra.mrb[0].mxu0 %v219
    %v528 = vpop.f32.mrb[0].mxu0
    %v529 = vadd.f32 %v458, %v528
    %v530 = vpop.f32.mrb[0].mxu0
    %v531 = vadd.f32 %v460, %v530
    %532 = vdwg.mxu0
    %533 = vmatprep.subr.mxu0 0.0
    %534 = vmatpush1.msra.mxu0 %v223
    %535 = vmatprep.subr.mxu0 0.0
    %536 = vmatpush1.msra.mxu0 %v226
    %537 = vmatprep.subr.mxu0 0.0
    %538 = vmatpush1.msra.mxu0 %v229
    %539 = vmatprep.subr.mxu0 0.0
    %540 = vmatpush1.msra.mxu0 %v232
    %541 = vmatprep.subr.mxu0 0.0
    %542 = vmatpush1.msra.mxu0 %v235
    %543 = vmatprep.subr.mxu0 0.0
    %544 = vmatpush1.msra.mxu0 %v238
    %545 = vmatprep.subr.mxu0 0.0
    %546 = vmatpush1.msra.mxu0 %v241
    %547 = vmatprep.subr.mxu0 0.0
    %548 = vmatpush1.msra.mxu0 %v244
    %549 = vmatprep.subr.mxu0 0.0
    %550 = vmatpush1.msra.mxu0 %v247
    %551 = vmatprep.subr.mxu0 0.0
    %552 = vmatpush1.msra.mxu0 %v250
    %553 = vmatprep.subr.mxu0 0.0
    %554 = vmatpush1.msra.mxu0 %v253
    %555 = vmatprep.subr.mxu0 0.0
    %556 = vmatpush1.msra.mxu0 %v256
    %557 = vmatprep.subr.mxu0 0.0
    %558 = vmatpush1.msra.mxu0 %v259
    %559 = vmatprep.subr.mxu0 0.0
    %560 = vmatpush1.msra.mxu0 %v262
    %561 = vmatprep.subr.mxu0 0.0
    %562 = vmatpush1.msra.mxu0 %v265
    %563 = vmatprep.subr.mxu0 0.0
    %564 = vmatpush1.msra.mxu0 %v268
    %565 = vmatprep.subr.mxu0 0.0
    %566 = vmatpush1.msra.mxu0 %v271
    %567 = vmatprep.subr.mxu0 0.0
    %568 = vmatpush1.msra.mxu0 %v274
    %569 = vmatprep.subr.mxu0 0.0
    %570 = vmatpush1.msra.mxu0 %v277
    %571 = vmatprep.subr.mxu0 0.0
    %572 = vmatpush1.msra.mxu0 %v280
    %573 = vmatprep.subr.mxu0 0.0
    %574 = vmatpush1.msra.mxu0 %v283
    %575 = vmatprep.subr.mxu0 0.0
    %576 = vmatpush1.msra.mxu0 %v286
    %577 = vmatprep.subr.mxu0 0.0
    %578 = vmatpush1.msra.mxu0 %v289
    %579 = vmatprep.subr.mxu0 0.0
    %580 = vmatpush1.msra.mxu0 %v292
    %581 = vmatprep.subr.mxu0 0.0
    %582 = vmatpush1.msra.mxu0 %v295
    %583 = vmatprep.subr.mxu0 0.0
    %584 = vmatpush1.msra.mxu0 %v298
    %585 = vmatprep.subr.mxu0 0.0
    %586 = vmatpush1.msra.mxu0 %v301
    %587 = vmatprep.subr.mxu0 0.0
    %588 = vmatpush1.msra.mxu0 %v304
    %589 = vmatprep.subr.mxu0 0.0
    %590 = vmatpush1.msra.mxu0 %v307
    %591 = vmatprep.subr.mxu0 0.0
    %592 = vmatpush1.msra.mxu0 %v310
    %593 = vmatprep.subr.mxu0 0.0
    %594 = vmatpush1.msra.mxu0 %v313
    %595 = vmatprep.subr.mxu0 0.0
    %596 = vmatpush1.msra.mxu0 %v316
    %597 = vmatprep.mubr.f32.mxu0 %v218
    %598 = vmatmul.mubr.f32.gmra.mrb[0].mxu0 %v217
    %v599 = vpop.f32.mrb[0].mxu0
    %v600 = vadd.f32 %v384, %v599
    %v601 = vpop.f32.mrb[0].mxu0
    %602 = vdwg.mxu0
    %603 = vmatprep.subr.mxu0 0.0
    %604 = vmatpush1.msra.mxu0 %v319
    %605 = vmatprep.subr.mxu0 0.0
    %606 = vmatpush1.msra.mxu0 %v322
    %607 = vmatprep.subr.mxu0 0.0
    %608 = vmatpush1.msra.mxu0 %v325
    %609 = vmatprep.subr.mxu0 0.0
    %610 = vmatpush1.msra.mxu0 %v328
    %611 = vmatprep.subr.mxu0 0.0
    %612 = vmatpush1.msra.mxu0 %v331
    %613 = vmatprep.subr.mxu0 0.0
    %614 = vmatpush1.msra.mxu0 %v334
    %615 = vmatprep.subr.mxu0 0.0
    %616 = vmatpush1.msra.mxu0 %v337
    %617 = vmatprep.subr.mxu0 0.0
    %618 = vmatpush1.msra.mxu0 %v340
    %619 = vmatprep.subr.mxu0 0.0
    %620 = vmatpush1.msra.mxu0 %v343
    %621 = vmatprep.subr.mxu0 0.0
    %622 = vmatpush1.msra.mxu0 %v346
    %623 = vmatprep.subr.mxu0 0.0
    %624 = vmatpush1.msra.mxu0 %v349
    %625 = vmatprep.subr.mxu0 0.0
    %626 = vmatpush1.msra.mxu0 %v352
    %627 = vmatprep.subr.mxu0 0.0
    %628 = vmatpush1.msra.mxu0 %v355
    %629 = vmatprep.subr.mxu0 0.0
    %630 = vmatpush1.msra.mxu0 %v358
    %631 = vmatprep.subr.mxu0 0.0
    %632 = vmatpush1.msra.mxu0 %v361
    %633 = vmatprep.subr.mxu0 0.0
    %634 = vmatpush1.msra.mxu0 %v364
    %635 = vmatprep.subr.mxu0 0.0
    %636 = vmatpush1.msra.mxu0 %v367
    %637 = vmatprep.subr.mxu0 0.0
    %638 = vmatpush1.msra.mxu0 %v370
    %639 = vmatprep.subr.mxu0 0.0
    %640 = vmatpush1.msra.mxu0 0.0
    %641 = vmatprep.subr.mxu0 0.0
    %642 = vmatpush1.msra.mxu0 0.0
    %643 = vmatprep.subr.mxu0 0.0
    %644 = vmatpush1.msra.mxu0 0.0
    %645 = vmatprep.subr.mxu0 0.0
    %646 = vmatpush1.msra.mxu0 0.0
    %647 = vmatprep.subr.mxu0 0.0
    %648 = vmatpush1.msra.mxu0 0.0
    %649 = vmatprep.subr.mxu0 0.0
    %650 = vmatpush1.msra.mxu0 0.0
    %651 = vmatprep.subr.mxu0 0.0
    %652 = vmatpush1.msra.mxu0 0.0
    %653 = vmatprep.subr.mxu0 0.0
    %654 = vmatpush1.msra.mxu0 0.0
    %655 = vmatprep.subr.mxu0 0.0
    %656 = vmatpush1.msra.mxu0 0.0
    %657 = vmatprep.subr.mxu0 0.0
    %658 = vmatpush1.msra.mxu0 0.0
    %659 = vmatprep.subr.mxu0 0.0
    %660 = vmatpush1.msra.mxu0 0.0
    %661 = vmatprep.subr.mxu0 0.0
    %662 = vmatpush1.msra.mxu0 0.0
    %663 = vmatprep.subr.mxu0 0.0
    %664 = vmatpush1.msra.mxu0 0.0
    %665 = vmatprep.subr.mxu0 0.0
    %666 = vmatpush1.msra.mxu0 0.0
    %667 = vmatprep.mubr.f32.mxu0 %v389
    %668 = vmatmul.mubr.f32.gmra.mrb[0].mxu0 %v219
    %v669 = vpop.f32.mrb[0].mxu0
    %v670 = vadd.f32 %v600, %v669
    %v671 = vpop.f32.mrb[0].mxu0
    %672 = vdwg.mxu0
    %v673 = vmax.f32 %v529, 0.0
    %v674 = vmax.f32 %v531, 0.0
    %v675 = vmax.f32 %v670, 0.0
    %v676 = vld [vmem:[%s5] sm:$0xff]
    %v677 = vld [vmem:[%s5 + $0x8] sm:$0xff]
    %v678 = vld [vmem:[%s5 + $0x10] sm:$0xff]
    %v679 = vld [vmem:[%s5 + $0x18] sm:$0xff]
    %v680 = vld [vmem:[%s5 + $0x20] sm:$0xff]
    %v681 = vld [vmem:[%s5 + $0x28] sm:$0xff]
    %v682 = vld [vmem:[%s5 + $0x30] sm:$0xff]
    %v683 = vld [vmem:[%s5 + $0x38] sm:$0xff]
    %v684 = vld [vmem:[%s5 + $0x40] sm:$0xff]
    %v685 = vld [vmem:[%s5 + $0x48] sm:$0xff]
    %v686 = vld [vmem:[%s5 + $0x50] sm:$0xff]
    %v687 = vld [vmem:[%s5 + $0x58] sm:$0xff]
    %v688 = vld [vmem:[%s5 + $0x60] sm:$0xff]
    %v689 = vld [vmem:[%s5 + $0x68] sm:$0xff]
    %v690 = vld [vmem:[%s5 + $0x70] sm:$0xff]
    %v691 = vld [vmem:[%s5 + $0x78] sm:$0xff]
    %v692 = vld [vmem:[%s5 + $0x80] sm:$0xff]
    %v693 = vld [vmem:[%s5 + $0x88] sm:$0xff]
    %v694 = vld [vmem:[%s5 + $0x90] sm:$0xff]
    %v695 = vld [vmem:[%s5 + $0x98] sm:$0xff]
    %v696 = vld [vmem:[%s5 + $0xa0] sm:$0xff]
    %v697 = vld [vmem:[%s5 + $0xa8] sm:$0xff]
    %v698 = vld [vmem:[%s5 + $0xb0] sm:$0xff]
    %v699 = vld [vmem:[%s5 + $0xb8] sm:$0xff]
    %v700 = vld [vmem:[%s5 + $0xc0] sm:$0xff]
    %v701 = vld [vmem:[%s5 + $0xc8] sm:$0xff]
    %v702 = vld [vmem:[%s5 + $0xd0] sm:$0xff]
    %v703 = vld [vmem:[%s5 + $0xd8] sm:$0xff]
    %v704 = vld [vmem:[%s5 + $0xe0] sm:$0xff]
    %v705 = vld [vmem:[%s5 + $0xe8] sm:$0xff]
    %v706 = vld [vmem:[%s5 + $0xf0] sm:$0xff]
    %v707 = vld [vmem:[%s5 + $0xf8] sm:$0xff]
    %v708 = vld [vmem:[%s5 + $0x100] sm:$0xff]
    %v709 = vld [vmem:[%s5 + $0x108] sm:$0xff]
    %v710 = vld [vmem:[%s5 + $0x110] sm:$0xff]
    %v711 = vld [vmem:[%s5 + $0x118] sm:$0xff]
    %v712 = vld [vmem:[%s5 + $0x120] sm:$0xff]
    %v713 = vld [vmem:[%s5 + $0x128] sm:$0xf]
    %v714 = vld [vmem:[%s6] sm:$0x1]
    %v716 = vlaneseq
    %v717 = vshrl.u32 %v716, 7
    %v718 = vsub.s32 0, %v717
    %v719 = vrot.slane %v714, %v718
    %vm721 = vcmask 359424
    %v723 = vsel %vm721, %v675, 0
    %vm725 = vcmask 1043456
    %v727 = vsel %vm725, %v713, 0
    %729 = vmatprep.subr.mxu0 0.0
    %730 = vmatpush1.msra.mxu0 %v676
    %731 = vmatprep.subr.mxu0 0.0
    %732 = vmatpush1.msra.mxu0 %v677
    %733 = vmatprep.subr.mxu0 0.0
    %734 = vmatpush1.msra.mxu0 %v678
    %735 = vmatprep.subr.mxu0 0.0
    %736 = vmatpush1.msra.mxu0 %v679
    %737 = vmatprep.subr.mxu0 0.0
    %738 = vmatpush1.msra.mxu0 %v680
    %739 = vmatprep.subr.mxu0 0.0
    %740 = vmatpush1.msra.mxu0 %v681
    %741 = vmatprep.subr.mxu0 0.0
    %742 = vmatpush1.msra.mxu0 %v682
    %743 = vmatprep.subr.mxu0 0.0
    %744 = vmatpush1.msra.mxu0 %v683
    %745 = vmatprep.subr.mxu0 0.0
    %746 = vmatpush1.msra.mxu0 %v684
    %747 = vmatprep.subr.mxu0 0.0
    %748 = vmatpush1.msra.mxu0 %v685
    %749 = vmatprep.subr.mxu0 0.0
    %750 = vmatpush1.msra.mxu0 %v686
    %751 = vmatprep.subr.mxu0 0.0
    %752 = vmatpush1.msra.mxu0 %v687
    %753 = vmatprep.subr.mxu0 0.0
    %754 = vmatpush1.msra.mxu0 %v688
    %755 = vmatprep.subr.mxu0 0.0
    %756 = vmatpush1.msra.mxu0 %v689
    %757 = vmatprep.subr.mxu0 0.0
    %758 = vmatpush1.msra.mxu0 %v690
    %759 = vmatprep.subr.mxu0 0.0
    %760 = vmatpush1.msra.mxu0 %v691
    %761 = vmatprep.subr.mxu0 0.0
    %762 = vmatpush1.msra.mxu0 %v692
    %763 = vmatprep.subr.mxu0 0.0
    %764 = vmatpush1.msra.mxu0 %v693
    %765 = vmatprep.subr.mxu0 0.0
    %766 = vmatpush1.msra.mxu0 %v694
    %767 = vmatprep.subr.mxu0 0.0
    %768 = vmatpush1.msra.mxu0 %v695
    %769 = vmatprep.subr.mxu0 0.0
    %770 = vmatpush1.msra.mxu0 %v696
    %771 = vmatprep.subr.mxu0 0.0
    %772 = vmatpush1.msra.mxu0 %v697
    %773 = vmatprep.subr.mxu0 0.0
    %774 = vmatpush1.msra.mxu0 %v698
    %775 = vmatprep.subr.mxu0 0.0
    %776 = vmatpush1.msra.mxu0 %v699
    %777 = vmatprep.subr.mxu0 0.0
    %778 = vmatpush1.msra.mxu0 %v700
    %779 = vmatprep.subr.mxu0 0.0
    %780 = vmatpush1.msra.mxu0 %v701
    %781 = vmatprep.subr.mxu0 0.0
    %782 = vmatpush1.msra.mxu0 %v702
    %783 = vmatprep.subr.mxu0 0.0
    %784 = vmatpush1.msra.mxu0 %v703
    %785 = vmatprep.subr.mxu0 0.0
    %786 = vmatpush1.msra.mxu0 %v704
    %787 = vmatprep.subr.mxu0 0.0
    %788 = vmatpush1.msra.mxu0 %v705
    %789 = vmatprep.subr.mxu0 0.0
    %790 = vmatpush1.msra.mxu0 %v706
    %791 = vmatprep.subr.mxu0 0.0
    %792 = vmatpush1.msra.mxu0 %v707
    %793 = vmatprep.mubr.f32.mxu0 %v674
    %794 = vmatmul.mubr.f32.gmra.mrb[0].mxu0 %v673
    %v795 = vpop.f32.mrb[0].mxu0
    %v796 = vadd.f32 %v719, %v795
    %v797 = vpop.f32.mrb[0].mxu0
    %798 = vdwg.mxu0
    %799 = vmatprep.subr.mxu0 0.0
    %800 = vmatpush1.msra.mxu0 %v708
    %801 = vmatprep.subr.mxu0 0.0
    %802 = vmatpush1.msra.mxu0 %v709
    %803 = vmatprep.subr.mxu0 0.0
    %804 = vmatpush1.msra.mxu0 %v710
    %805 = vmatprep.subr.mxu0 0.0
    %806 = vmatpush1.msra.mxu0 %v711
    %807 = vmatprep.subr.mxu0 0.0
    %808 = vmatpush1.msra.mxu0 %v712
    %809 = vmatprep.subr.mxu0 0.0
    %810 = vmatpush1.msra.mxu0 %v727
    %811 = vmatprep.subr.mxu0 0.0
    %812 = vmatpush1.msra.mxu0 0.0
    %813 = vmatprep.subr.mxu0 0.0
    %814 = vmatpush1.msra.mxu0 0.0
    %815 = vmatprep.subr.mxu0 0.0
    %816 = vmatpush1.msra.mxu0 0.0
    %817 = vmatprep.subr.mxu0 0.0
    %818 = vmatpush1.msra.mxu0 0.0
    %819 = vmatprep.subr.mxu0 0.0
    %820 = vmatpush1.msra.mxu0 0.0
    %821 = vmatprep.subr.mxu0 0.0
    %822 = vmatpush1.msra.mxu0 0.0
    %823 = vmatprep.subr.mxu0 0.0
    %824 = vmatpush1.msra.mxu0 0.0
    %825 = vmatprep.subr.mxu0 0.0
    %826 = vmatpush1.msra.mxu0 0.0
    %827 = vmatprep.subr.mxu0 0.0
    %828 = vmatpush1.msra.mxu0 0.0
    %829 = vmatprep.subr.mxu0 0.0
    %830 = vmatpush1.msra.mxu0 0.0
    %831 = vmatprep.subr.mxu0 0.0
    %832 = vmatpush1.msra.mxu0 0.0
    %833 = vmatprep.subr.mxu0 0.0
    %834 = vmatpush1.msra.mxu0 0.0
    %835 = vmatprep.subr.mxu0 0.0
    %836 = vmatpush1.msra.mxu0 0.0
    %837 = vmatprep.subr.mxu0 0.0
    %838 = vmatpush1.msra.mxu0 0.0
    %839 = vmatprep.subr.mxu0 0.0
    %840 = vmatpush1.msra.mxu0 0.0
    %841 = vmatprep.subr.mxu0 0.0
    %842 = vmatpush1.msra.mxu0 0.0
    %843 = vmatprep.subr.mxu0 0.0
    %844 = vmatpush1.msra.mxu0 0.0
    %845 = vmatprep.subr.mxu0 0.0
    %846 = vmatpush1.msra.mxu0 0.0
    %847 = vmatprep.subr.mxu0 0.0
    %848 = vmatpush1.msra.mxu0 0.0
    %849 = vmatprep.subr.mxu0 0.0
    %850 = vmatpush1.msra.mxu0 0.0
    %851 = vmatprep.subr.mxu0 0.0
    %852 = vmatpush1.msra.mxu0 0.0
    %853 = vmatprep.subr.mxu0 0.0
    %854 = vmatpush1.msra.mxu0 0.0
    %855 = vmatprep.subr.mxu0 0.0
    %856 = vmatpush1.msra.mxu0 0.0
    %857 = vmatprep.subr.mxu0 0.0
    %858 = vmatpush1.msra.mxu0 0.0
    %859 = vmatprep.subr.mxu0 0.0
    %860 = vmatpush1.msra.mxu0 0.0
    %861 = vmatprep.subr.mxu0 0.0
    %862 = vmatpush1.msra.mxu0 0.0
    %863 = vmatprep.mubr.f32.mxu0 0.0
    %864 = vmatmul.mubr.f32.gmra.mrb[0].mxu0 %v723
    %v865 = vpop.f32.mrb[0].mxu0
    %v866 = vadd.f32 %v796, %v865
    %v867 = vpop.f32.mrb[0].mxu0
    %868 = vdwg.mxu0
    %v869 = vtanh.pop %v866
    %v870 = vmul.f32 %v869, 2.0
    %vm871 = vcmask 31744
    %872 = vst.msk [vmem:[%s7] sm:$0xff] %vm871, %v870
    // Predicated region
    $region34: #{actor_forward.1} parent=1 // pred_check
      _
    $region35: #{actor_forward.1} parent=1 // pred_check_branch
      %874 = sbr.rel (0) target = $region37
    $region36: #{actor_forward.1} parent=1 // pred_region
      _
    $region37: #{actor_forward.1} parent=1 // pred_fallthru
      _
    // Predicated region
    $region38: #{actor_forward.1} parent=1 // pred_check
      _
    $region39: #{actor_forward.1} parent=1 // pred_check_branch
      %876 = sbr.rel (0) target = $region41
    $region40: #{actor_forward.1} parent=1 // pred_region
      _
    $region41: #{actor_forward.1} parent=1 // pred_fallthru
      _
    %877 = vsyncpa [#allocation3], 1

</llo_original>
